<compile_context>
chip_gen: v7x
topology: tpu7x:2x2x1
jax: 0.10.0
libtpu: 0.0.40
codegen_flags: <defaults>
</compile_context>

<pallas_src>
import jax
import jax.numpy as jnp
import numpy as np
from jax.experimental import pallas as pl
from jax.experimental.pallas import tpu as pltpu


def _round_up(n, m):
    return (n + m - 1) // m * m


# ------------------------------------------------------------------
# Pallas kernel (one (batch, spatial-tile) grid point):
#   g1  = WgT @ g                          (F_int, tn)  f32 accumulate
#   x1  = WxT @ x                          (F_int, tn)  f32 accumulate
#   p   = relu(g1 + x1 + b1)               b1 = bg + bx (BN-folded, pre-summed on host)
#   psi = sigmoid(sum_k wp[k] * p[k] + bp) (1, tn)       VPU mul + XLU reduce + EUP
#   out = x * psi                          (F_l, tn)     lane-dense store
# ------------------------------------------------------------------
def attention_block_kernel(g_ref, x_ref, wgT_ref, wxT_ref, b1_ref, wp_ref, bp_ref,
                           out_ref):
    g = g_ref[...]                                       # (F_g, tn) compute dtype
    x = x_ref[...]                                       # (F_l, tn) compute dtype

    g1 = jnp.dot(wgT_ref[...], g, preferred_element_type=jnp.float32)
    x1 = jnp.dot(wxT_ref[...], x, preferred_element_type=jnp.float32)
    p = jnp.maximum(g1 + x1 + b1_ref[...], 0.0)          # (F_int, tn) f32

    # Width-1 projection: keep it off the MXU (output width 1 would waste the array).
    psi_lin = jnp.sum(p * wp_ref[...], axis=0, keepdims=True) + bp_ref[...]   # (1, tn)
    psi = jax.nn.sigmoid(psi_lin)                        # f32

    out_ref[...] = (x * psi).astype(out_ref.dtype)       # (F_l, tn), lane-dense store


def attention_block_pallas(g3, x3, wgT, wxT, b1, wp, bp, *, tn):
    """g3: (B, F_g, S), x3: (B, F_l, S). S must be a multiple of tn, tn a multiple of 128."""
    B, F_g, S = g3.shape
    _, F_l, _ = x3.shape
    F_int = wgT.shape[0]
    assert S % tn == 0 and tn % 128 == 0

    grid = (B, S // tn)
    itemsize = jnp.dtype(g3.dtype).itemsize

    # Explicit VMEM budget so large tiles compile on every generation (v5e default is
    # only 16 MiB scoped, v6e 32 MiB).  Capped at 64 MiB so it also fits v7x.
    act_bytes = 2 * (F_g + 2 * F_l) * tn * itemsize              # double-buffered g, x, out
    inter_bytes = (3 * F_int + 2) * tn * 4                        # f32 g1/x1/p (+ psi row)
    const_bytes = (F_int * (F_g + F_l) + 2 * F_int + 1) * 4 * 2   # weights/biases (margin x2)
    vmem_needed = act_bytes + inter_bytes + const_bytes
    vmem_limit = int(min(max(vmem_needed * 1.5, 32 << 20), 64 << 20))

    def row_spec(C):
        # (batch squeezed, full channel dim, lane tile of the spatial axis)
        return pl.BlockSpec((pl.Squeezed(), C, tn), lambda b, j: (b, 0, j))

    def const_spec(r, c):
        # Constant operands: no point double-buffering them (index map is constant).
        kwargs = {}
        if hasattr(pl, "Buffered"):
            kwargs["pipeline_mode"] = pl.Buffered(1)
        return pl.BlockSpec((r, c), lambda b, j: (0, 0), **kwargs)

    return pl.pallas_call(
        attention_block_kernel,
        out_shape=jax.ShapeDtypeStruct((B, F_l, S), x3.dtype),
        grid_spec=pltpu.PrefetchScalarGridSpec(
            num_scalar_prefetch=0,
            grid=grid,
            in_specs=[
                row_spec(F_g),                # g tile    (F_g, tn)
                row_spec(F_l),                # x tile    (F_l, tn)
                const_spec(F_int, F_g),       # WgT (BN folded)
                const_spec(F_int, F_l),       # WxT (BN folded)
                const_spec(F_int, 1),         # b1 = bg + bx (f32)
                const_spec(F_int, 1),         # wp (psi weights as a column, f32)
                const_spec(1, 1),             # bp (f32)
            ],
            out_specs=row_spec(F_l),
        ),
        # Both grid axes are fully independent -> megacore sharding on v7x.
        compiler_params=pltpu.CompilerParams(
            dimension_semantics=("parallel", "parallel"),
            vmem_limit_bytes=vmem_limit),
    )(g3, x3, wgT, wxT, b1, wp, bp)


# ------------------------------------------------------------------
# Tile picker: largest lane tile (multiple of 128) that
#   * divides the 128-padded spatial row (so no pad-to-tile waste),
#   * fits a conservative per-step VMEM budget (works on v7x's 64 MiB),
#   * still leaves >= min_steps total grid steps when the shape allows it (megacore).
# ------------------------------------------------------------------
def _pick_tile(HW_pad, B, F_g, F_l, F_int, itemsize, *,
               vmem_budget=36 << 20, max_lanes=32768, min_steps=8):
    m = HW_pad // 128
    per_lane = 2 * (F_g + 2 * F_l) * itemsize + (3 * F_int + 2) * 4
    lanes_cap = max(128, min(max_lanes, vmem_budget // per_lane))
    divisors = [d for d in range(1, m + 1) if m % d == 0]
    fit = [d for d in divisors if 128 * d <= lanes_cap] or [1]
    balanced = [d for d in fit if B * (m // d) >= min_steps]
    d = max(balanced) if balanced else max(fit)
    return 128 * d


# ------------------------------------------------------------------
# Parameter setup (deterministic) + BatchNorm (eval) folding.
#   BN(y) = gamma * (y - mean) / sqrt(var + eps) + beta
#   folded:  W' = W * s,  b' = (b - mean) * s + beta,  s = gamma / sqrt(var + eps)
# Kernel layout: transposed weights (C_out, C_in), pre-summed projection bias,
# psi weights as a (F_int, 1) column.
# ------------------------------------------------------------------
def make_params(key, F_g, F_l, F_int, eps=1e-5):
    ks = jax.random.split(key, 9)

    def bn_params(k, c):
        k1, k2, k3 = jax.random.split(k, 3)
        gamma = 1.0 + 0.1 * jax.random.normal(k1, (c,), jnp.float32)
        beta = 0.1 * jax.random.normal(k2, (c,), jnp.float32)
        mean = 0.1 * jax.random.normal(k3, (c,), jnp.float32)
        var = jnp.ones((c,), jnp.float32) * 0.9
        return gamma, beta, mean, var

    def fold(w, b, gamma, beta, mean, var):
        # w: (C_in, C_out), b: (C_out,) -- BN over C_out (eval mode, running stats)
        s = gamma / jnp.sqrt(var + eps)
        return w * s[None, :], (b - mean) * s + beta

    wg = 0.2 * jax.random.normal(ks[0], (F_g, F_int), jnp.float32)
    bg = 0.1 * jax.random.normal(ks[1], (F_int,), jnp.float32)
    wg_f, bg_f = fold(wg, bg, *bn_params(ks[2], F_int))

    wx = 0.2 * jax.random.normal(ks[3], (F_l, F_int), jnp.float32)
    bx = 0.1 * jax.random.normal(ks[4], (F_int,), jnp.float32)
    wx_f, bx_f = fold(wx, bx, *bn_params(ks[5], F_int))

    wp = 0.2 * jax.random.normal(ks[6], (F_int, 1), jnp.float32)
    bp = 0.1 * jax.random.normal(ks[7], (1,), jnp.float32)
    wp_f, bp_f = fold(wp, bp, *bn_params(ks[8], 1))

    wgT = wg_f.T                                 # (F_int, F_g)
    wxT = wx_f.T                                 # (F_int, F_l)
    b1 = (bg_f + bx_f).reshape(F_int, 1)         # single bias for relu(g1 + x1 + b1)
    wp_col = wp_f.reshape(F_int, 1)
    bp_s = bp_f.reshape(1, 1)
    return wgT, wxT, b1, wp_col, bp_s


# ------------------------------------------------------------------
# Wrapper: NCHW -> (B, C, H*W) reshape (no transposes), pad only to the 128-lane
# granule, auto-sized tile that divides the padded row, kernel call, unpad if needed.
# Activations (and output) run in `compute_dtype` (bf16 by default -> half the HBM
# traffic); bias / psi constants stay f32.
# ------------------------------------------------------------------
def attention_block(g_nchw, x_nchw, params, *, compute_dtype=jnp.bfloat16,
                    max_lanes=32768):
    wgT, wxT, b1, wp, bp = params
    B, Cg, H, W = g_nchw.shape
    _, Cl, _, _ = x_nchw.shape
    F_int = wgT.shape[0]
    HW = H * W
    HW_pad = _round_up(HW, 128)                  # pad only to the lane granule
    itemsize = jnp.dtype(compute_dtype).itemsize
    tn = _pick_tile(HW_pad, B, Cg, Cl, F_int, itemsize, max_lanes=max_lanes)

    g3 = g_nchw.reshape(B, Cg, HW).astype(compute_dtype)
    x3 = x_nchw.reshape(B, Cl, HW).astype(compute_dtype)
    if HW_pad != HW:
        pad = ((0, 0), (0, 0), (0, HW_pad - HW))
        g3 = jnp.pad(g3, pad)
        x3 = jnp.pad(x3, pad)

    out3 = attention_block_pallas(g3, x3,
                                  wgT.astype(compute_dtype),
                                  wxT.astype(compute_dtype),
                                  b1, wp, bp, tn=tn)
    if HW_pad != HW:
        out3 = out3[:, :, :HW]
    return out3.reshape(B, Cl, H, W)


# Pure-JAX reference (same math, same channel-first layout, f32) for verification.
def attention_block_ref(g_nchw, x_nchw, params):
    wgT, wxT, b1, wp, bp = params
    B, Cg, H, W = g_nchw.shape
    _, Cl, _, _ = x_nchw.shape
    g2 = g_nchw.reshape(B, Cg, H * W)
    x2 = x_nchw.reshape(B, Cl, H * W)
    g1 = jnp.einsum('ic,bcn->bin', wgT, g2)
    x1 = jnp.einsum('ic,bcn->bin', wxT, x2)
    p = jnp.maximum(g1 + x1 + b1[None], 0.0)
    psi = jax.nn.sigmoid(jnp.sum(p * wp[None], axis=1, keepdims=True) + bp[None])
    out = x2 * psi
    return out.reshape(B, Cl, H, W)


if __name__ == "__main__":
    key = jax.random.PRNGKey(0)
    k_g, k_x, k_p = jax.random.split(key, 3)

    B, F_g, F_l, F_int, H, W = 2, 4, 4, 8, 16, 16
    g = jax.random.normal(k_g, (B, F_g, H, W), jnp.float32)
    x = jax.random.normal(k_x, (B, F_l, H, W), jnp.float32)

    params = make_params(k_p, F_g, F_l, F_int)
    ref = attention_block_ref(g, x, params)

    # Default bf16 activation path (halved HBM traffic) -- loose tolerance.
    out_bf16 = jax.block_until_ready(attention_block(g, x, params))
    np.testing.assert_allclose(np.asarray(out_bf16, dtype=np.float32), np.asarray(ref),
                               rtol=3e-2, atol=3e-2)

    # Full-precision path -- tight tolerance (verifies exact math / BN folding).
    out_f32 = jax.block_until_ready(
        attention_block(g, x, params, compute_dtype=jnp.float32))
    np.testing.assert_allclose(np.asarray(out_f32), np.asarray(ref),
                               rtol=1e-5, atol=1e-5)

    # Spatial size NOT a multiple of 128 (exercises the 128-granule padding path).
    g2 = jax.random.normal(jax.random.PRNGKey(1), (B, F_g, 10, 10), jnp.float32)
    x2 = jax.random.normal(jax.random.PRNGKey(2), (B, F_l, 10, 10), jnp.float32)
    out2 = jax.block_until_ready(attention_block(g2, x2, params))
    ref2 = attention_block_ref(g2, x2, params)
    np.testing.assert_allclose(np.asarray(out2, dtype=np.float32), np.asarray(ref2),
                               rtol=3e-2, atol=3e-2)

    print("KERNEL_OK")
</pallas_src>

<mosaic_0001>
module attributes {stable_mosaic.version = 11 : i64} {
  func.func @attention_block_kernel(%arg0: i32, %arg1: i32, %arg2: memref<1x4x256xbf16, #tpu.memory_space<vmem>>, %arg3: memref<1x4x256xbf16, #tpu.memory_space<vmem>>, %arg4: memref<8x4xbf16, #tpu.memory_space<vmem>>, %arg5: memref<8x4xbf16, #tpu.memory_space<vmem>>, %arg6: memref<8x1xf32, #tpu.memory_space<vmem>>, %arg7: memref<8x1xf32, #tpu.memory_space<vmem>>, %arg8: memref<1x1xf32, #tpu.memory_space<vmem>>, %arg9: memref<1x4x256xbf16, #tpu.memory_space<vmem>>) attributes {dimension_semantics = [#tpu.dimension_semantics<parallel>, #tpu.dimension_semantics<parallel>], iteration_bounds = array<i64: 2, 1>, scalar_prefetch = 0 : i64, scratch_operands = 0 : i64, tpu.core_type = #tpu.core_type<tc>, window_params = [{transform_indices = @transform_0, window_bounds = array<i64: 1, 4, 256>}, {transform_indices = @transform_1, window_bounds = array<i64: 1, 4, 256>}, {pipeline_mode = #tpu.pipeline_mode<synchronous>, transform_indices = @transform_2, window_bounds = array<i64: 8, 4>}, {pipeline_mode = #tpu.pipeline_mode<synchronous>, transform_indices = @transform_3, window_bounds = array<i64: 8, 4>}, {pipeline_mode = #tpu.pipeline_mode<synchronous>, transform_indices = @transform_4, window_bounds = array<i64: 8, 1>}, {pipeline_mode = #tpu.pipeline_mode<synchronous>, transform_indices = @transform_5, window_bounds = array<i64: 8, 1>}, {pipeline_mode = #tpu.pipeline_mode<synchronous>, transform_indices = @transform_6, window_bounds = array<i64: 1, 1>}, {transform_indices = @transform_7, window_bounds = array<i64: 1, 4, 256>}]} {
    %c0 = arith.constant 0 : index
    %c0_0 = arith.constant 0 : index
    %c0_1 = arith.constant 0 : index
    %0 = vector.load %arg2[%c0, %c0_0, %c0_1] : memref<1x4x256xbf16, #tpu.memory_space<vmem>>, vector<1x4x256xbf16>
    %1 = vector.shape_cast %0 : vector<1x4x256xbf16> to vector<4x256xbf16>
    %c0_2 = arith.constant 0 : index
    %c0_3 = arith.constant 0 : index
    %c0_4 = arith.constant 0 : index
    %2 = vector.load %arg3[%c0_2, %c0_3, %c0_4] : memref<1x4x256xbf16, #tpu.memory_space<vmem>>, vector<1x4x256xbf16>
    %3 = vector.shape_cast %2 : vector<1x4x256xbf16> to vector<4x256xbf16>
    %c0_5 = arith.constant 0 : index
    %c0_6 = arith.constant 0 : index
    %4 = vector.load %arg4[%c0_5, %c0_6] : memref<8x4xbf16, #tpu.memory_space<vmem>>, vector<8x4xbf16>
    %cst = arith.constant dense<0.000000e+00> : vector<8x256xf32>
    %5 = tpu.matmul %4, %1, %cst {dimension_numbers = #tpu.dot_dimension_numbers<[1], [0], [0], [1], [0, 0, 1, 1], [], []>} : vector<8x4xbf16>, vector<4x256xbf16>, vector<8x256xf32> -> vector<8x256xf32>
    %c0_7 = arith.constant 0 : index
    %c0_8 = arith.constant 0 : index
    %6 = vector.load %arg5[%c0_7, %c0_8] : memref<8x4xbf16, #tpu.memory_space<vmem>>, vector<8x4xbf16>
    %cst_9 = arith.constant dense<0.000000e+00> : vector<8x256xf32>
    %7 = tpu.matmul %6, %3, %cst_9 {dimension_numbers = #tpu.dot_dimension_numbers<[1], [0], [0], [1], [0, 0, 1, 1], [], []>} : vector<8x4xbf16>, vector<4x256xbf16>, vector<8x256xf32> -> vector<8x256xf32>
    %8 = arith.addf %5, %7 : vector<8x256xf32>
    %c0_10 = arith.constant 0 : index
    %c0_11 = arith.constant 0 : index
    %9 = vector.load %arg6[%c0_10, %c0_11] : memref<8x1xf32, #tpu.memory_space<vmem>>, vector<8x1xf32>
    %10 = vector.broadcast %9 : vector<8x1xf32> to vector<8x256xf32>
    %11 = arith.addf %8, %10 : vector<8x256xf32>
    %cst_12 = arith.constant 0.000000e+00 : f32
    %12 = vector.broadcast %cst_12 : f32 to vector<8x256xf32>
    %13 = arith.maximumf %11, %12 : vector<8x256xf32>
    %c0_13 = arith.constant 0 : index
    %c0_14 = arith.constant 0 : index
    %14 = vector.load %arg7[%c0_13, %c0_14] : memref<8x1xf32, #tpu.memory_space<vmem>>, vector<8x1xf32>
    %15 = vector.broadcast %14 : vector<8x1xf32> to vector<8x256xf32>
    %16 = arith.mulf %13, %15 : vector<8x256xf32>
    %cst_15 = arith.constant dense<0.000000e+00> : vector<256xf32>
    %17 = vector.multi_reduction <add>, %16, %cst_15 [0] : vector<8x256xf32> to vector<256xf32>
    %18 = vector.shape_cast %17 : vector<256xf32> to vector<1x256xf32>
    %c0_16 = arith.constant 0 : index
    %c0_17 = arith.constant 0 : index
    %19 = vector.load %arg8[%c0_16, %c0_17] : memref<1x1xf32, #tpu.memory_space<vmem>>, vector<1x1xf32>
    %20 = vector.broadcast %19 : vector<1x1xf32> to vector<1x256xf32>
    %21 = arith.addf %18, %20 : vector<1x256xf32>
    %22 = arith.negf %21 : vector<1x256xf32>
    %23 = math.exp %22 : vector<1x256xf32>
    %cst_18 = arith.constant 1.000000e+00 : f32
    %24 = vector.broadcast %cst_18 : f32 to vector<1x256xf32>
    %25 = arith.addf %24, %23 : vector<1x256xf32>
    %26 = arith.divf %24, %25 : vector<1x256xf32>
    %27 = arith.extf %3 : vector<4x256xbf16> to vector<4x256xf32>
    %28 = vector.broadcast %26 : vector<1x256xf32> to vector<4x256xf32>
    %29 = arith.mulf %27, %28 : vector<4x256xf32>
    %30 = arith.truncf %29 : vector<4x256xf32> to vector<4x256xbf16>
    %c0_19 = arith.constant 0 : index
    %c0_20 = arith.constant 0 : index
    %c0_21 = arith.constant 0 : index
    %31 = vector.load %arg9[%c0_19, %c0_20, %c0_21] : memref<1x4x256xbf16, #tpu.memory_space<vmem>>, vector<1x4x256xbf16>
    %32 = vector.shape_cast %31 : vector<1x4x256xbf16> to vector<4x256xbf16>
    %33 = vector.shape_cast %30 : vector<4x256xbf16> to vector<1x4x256xbf16>
    tpu.vector_store %arg9[%c0_19, %c0_20, %c0_21], %33 {strides = array<i32>} : memref<1x4x256xbf16, #tpu.memory_space<vmem>>, vector<1x4x256xbf16>,
    return
  }
  func.func @transform_0(%arg0: i32, %arg1: i32) -> (i32, i32, i32) {
    %c0_i32 = arith.constant 0 : i32
    %c0_i32_0 = arith.constant 0 : i32
    return %arg0, %c0_i32, %arg1 : i32, i32, i32
  }
  func.func @transform_1(%arg0: i32, %arg1: i32) -> (i32, i32, i32) {
    %c0_i32 = arith.constant 0 : i32
    %c0_i32_0 = arith.constant 0 : i32
    return %arg0, %c0_i32, %arg1 : i32, i32, i32
  }
  func.func @transform_2(%arg0: i32, %arg1: i32) -> (i32, i32) {
    %c0_i32 = arith.constant 0 : i32
    %c0_i32_0 = arith.constant 0 : i32
    %c0_i32_1 = arith.constant 0 : i32
    return %c0_i32, %c0_i32_0 : i32, i32
  }
  func.func @transform_3(%arg0: i32, %arg1: i32) -> (i32, i32) {
    %c0_i32 = arith.constant 0 : i32
    %c0_i32_0 = arith.constant 0 : i32
    %c0_i32_1 = arith.constant 0 : i32
    return %c0_i32, %c0_i32_0 : i32, i32
  }
  func.func @transform_4(%arg0: i32, %arg1: i32) -> (i32, i32) {
    %c0_i32 = arith.constant 0 : i32
    %c0_i32_0 = arith.constant 0 : i32
    %c0_i32_1 = arith.constant 0 : i32
    return %c0_i32, %c0_i32_0 : i32, i32
  }
  func.func @transform_5(%arg0: i32, %arg1: i32) -> (i32, i32) {
    %c0_i32 = arith.constant 0 : i32
    %c0_i32_0 = arith.constant 0 : i32
    %c0_i32_1 = arith.constant 0 : i32
    return %c0_i32, %c0_i32_0 : i32, i32
  }
  func.func @transform_6(%arg0: i32, %arg1: i32) -> (i32, i32) {
    %c0_i32 = arith.constant 0 : i32
    %c0_i32_0 = arith.constant 0 : i32
    %c0_i32_1 = arith.constant 0 : i32
    return %c0_i32, %c0_i32_0 : i32, i32
  }
  func.func @transform_7(%arg0: i32, %arg1: i32) -> (i32, i32, i32) {
    %c0_i32 = arith.constant 0 : i32
    %c0_i32_0 = arith.constant 0 : i32
    return %arg0, %c0_i32, %arg1 : i32, i32, i32
  }
}

</mosaic_0001>

<llo_original>
// kernel: tpu_custom_call.1
$region0: #{tpu_custom_call.1}
  #allocation0 [shape = 'u32[]', space=smem, size = 0x4, offset = 0x4, fixed_abs, tag = 'smem constant byte address 0x4 - core index']
  #allocation1 [shape = 'u32[144,128]{1,0:T(1,128)}', space=vmem, size = 0x12000, scoped, tag = 'internal scratch']
  #allocation2 [shape = 'f32[1,1]{1,0:T(1,128)S(1)}', space=vmem, size = 0x200, scoped, tag = 'scoped memory for tpu_custom_call.1']
  %s0 = inlined_call_operand.vmem [shape: bf16[2,4,256], index: 0, kind: input, shape index: {}]
  %s1 = inlined_call_operand.vmem [shape: bf16[2,4,256], index: 1, kind: input, shape index: {}]
  %s2 = inlined_call_operand.vmem [shape: bf16[8,4], index: 2, kind: input, shape index: {}]
  %s3 = inlined_call_operand.vmem [shape: bf16[8,4], index: 3, kind: input, shape index: {}]
  %s4 = inlined_call_operand.vmem [shape: f32[8,1], index: 4, kind: input, shape index: {}]
  %s5 = inlined_call_operand.vmem [shape: f32[8,1], index: 5, kind: input, shape index: {}]
  %s6 = inlined_call_operand.<no memory space> [shape: f32[1,1], index: 6, kind: input, shape index: {}]
  %s7 = inlined_call_operand.hbm [shape: bf16[2,4,256], index: 7, kind: output, shape index: {}]
  %s8 = sld [smem:[#allocation0]]
  $region61: #{tpu_custom_call.1} parent=0
    _
  %s10 = ssub.s32 1, %s8
  %s11 = scalar_select 0, %s10, %s8
  %v12 = vstv %s6
  %13 = vst [vmem:[#allocation2] sm:$0x1] %v12
  $region1: #{tpu_custom_call.1} parent=0
    #allocation3 [shape = 'u8[4096]{0}', space=vmem, size = 0x1000, scoped, tag = 'output window, operand 0']
    #allocation4 [shape = 's32[2]{0}', space=sflag, size = 0x8, scoped, tag = 'scoped memory for tpu_custom_call.1']
    %14 = vsyncpa [#allocation4], 0
    %s15 = scalar_lea.sflag [#allocation4], 1
    %16 = vsyncpa %s15, 0
    loop: start=0, step=1, limit=4
    $region2: #{tpu_custom_call.1} parent=1 // loop_pre_header
      _
    $region3: #{tpu_custom_call.1} parent=1 // loop_header
      %s18 = sphi 0, %s22
      %p19 = scmp.ge.s32.totalorder %s18, 4
      %s25 = sphi 0, %s37
      %s26 = sphi 0, %s33
      %s27 = sphi 0, %s25
      %s28 = sphi 0, %s26
      %s29 = sphi 0, %s27
      %s30 = sphi 0, %s28
      %s42 = sphi 0, %s44
      %s45 = sphi 0, %s42
      %s46 = sphi 0, %s45
      %s62 = sphi 0, %s46
      %s70 = sphi 0, %s72
      %s73 = sphi 0, %s70
      %s74 = sphi 0, %s73
      %s90 = sphi 0, %s74
      %s94 = sphi 0, %s94
      %s96 = sphi 0, %s94
      %s97 = sphi 0, %s96
      %s111 = sphi 0, %s97
      %s115 = sphi 0, %s115
      %s117 = sphi 0, %s115
      %s118 = sphi 0, %s117
      %s132 = sphi 0, %s118
      %s136 = sphi 0, %s136
      %s138 = sphi 0, %s136
      %s139 = sphi 0, %s138
      %s153 = sphi 0, %s139
      %s157 = sphi 0, %s157
      %s159 = sphi 0, %s157
      %s160 = sphi 0, %s159
      %s174 = sphi 0, %s160
      %s178 = sphi 0, %s178
      %s180 = sphi 0, %s178
      %s181 = sphi 0, %s180
      %s195 = sphi 0, %s181
      %s203 = sphi 0, %s205
      %s206 = sphi 0, %s203
      %s207 = sphi 0, %s206
      %s223 = sphi 0, %s207
    $region4: #{tpu_custom_call.1} parent=1 // loop_header_branch
      %21 = sbr.rel (%p19) target = $region8
    $region5: #{tpu_custom_call.1} parent=1 // loop_body
      %s23 = ssub.s32 %s18, 1
      %s24 = ssub.s32 %s18, 2
      %s31 = sadd.s32 1, %s26
      %p32 = scmp.ge.s32.totalorder %s31, 1
      %s33 = scalar_select %p32, 0, %s31
      %s34 = sadd.s32 1, %s25
      %s35 = scalar_select %p32, %s34, %s25
      %p36 = scmp.ge.s32.totalorder %s35, 2
      %s37 = scalar_select %p36, 0, %s35
      %s38 = ssub.s32 %s25, %s37
      %s39 = ssub.s32 %s26, %s33
      %s40 = sor.u32 %s38, %s39
      %p41 = scmp.eq.s32.totalorder %s40, 0
      %s43 = sadd.s32 %s42, 1
      %s44 = scalar_select %p41, %s42, %s43
      %p47 = pneg %p41
      %p48 = scmp.eq.s32.totalorder %s18, 1
      %p49 = por %p47, %p48
      %p50 = scmp.ne.s32.totalorder %s42, %s45
      %p51 = scmp.eq.s32.totalorder %s18, 0
      %p52 = por %p50, %p51
      %p53 = scmp.ne.s32.totalorder %s42, %s45
      %p54 = scmp.eq.s32.totalorder %s23, 1
      %p55 = por %p53, %p54
      %p56 = scmp.ne.s32.totalorder %s45, %s46
      %p57 = scmp.eq.s32.totalorder %s23, 0
      %p58 = por %p56, %p57
      %p59 = scmp.ne.s32.totalorder %s45, %s46
      %p60 = scmp.eq.s32.totalorder %s24, 1
      %p61 = por %p59, %p60
      %p63 = scmp.ne.s32.totalorder %s46, %s62
      %p64 = scmp.eq.s32.totalorder %s24, 0
      %p65 = por %p63, %p64
      %s66 = ssub.s32 %s25, %s37
      %s67 = ssub.s32 %s26, %s33
      %s68 = sor.u32 %s66, %s67
      %p69 = scmp.eq.s32.totalorder %s68, 0
      %s71 = sadd.s32 %s70, 1
      %s72 = scalar_select %p69, %s70, %s71
      %p75 = pneg %p69
      %p76 = scmp.eq.s32.totalorder %s18, 1
      %p77 = por %p75, %p76
      %p78 = scmp.ne.s32.totalorder %s70, %s73
      %p79 = scmp.eq.s32.totalorder %s18, 0
      %p80 = por %p78, %p79
      %p81 = scmp.ne.s32.totalorder %s70, %s73
      %p82 = scmp.eq.s32.totalorder %s23, 1
      %p83 = por %p81, %p82
      %p84 = scmp.ne.s32.totalorder %s73, %s74
      %p85 = scmp.eq.s32.totalorder %s23, 0
      %p86 = por %p84, %p85
      %p87 = scmp.ne.s32.totalorder %s73, %s74
      %p88 = scmp.eq.s32.totalorder %s24, 1
      %p89 = por %p87, %p88
      %p91 = scmp.ne.s32.totalorder %s74, %s90
      %p92 = scmp.eq.s32.totalorder %s24, 0
      %p93 = por %p91, %p92
      %s95 = sadd.s32 %s94, 1
      %p98 = scmp.eq.s32.totalorder %s18, 1
      %p99 = scmp.ne.s32.totalorder %s94, %s96
      %p100 = scmp.eq.s32.totalorder %s18, 0
      %p101 = por %p99, %p100
      %p102 = scmp.ne.s32.totalorder %s94, %s96
      %p103 = scmp.eq.s32.totalorder %s23, 1
      %p104 = por %p102, %p103
      %p105 = scmp.ne.s32.totalorder %s96, %s97
      %p106 = scmp.eq.s32.totalorder %s23, 0
      %p107 = por %p105, %p106
      %p108 = scmp.ne.s32.totalorder %s96, %s97
      %p109 = scmp.eq.s32.totalorder %s24, 1
      %p110 = por %p108, %p109
      %p112 = scmp.ne.s32.totalorder %s97, %s111
      %p113 = scmp.eq.s32.totalorder %s24, 0
      %p114 = por %p112, %p113
      %s116 = sadd.s32 %s115, 1
      %p119 = scmp.eq.s32.totalorder %s18, 1
      %p120 = scmp.ne.s32.totalorder %s115, %s117
      %p121 = scmp.eq.s32.totalorder %s18, 0
      %p122 = por %p120, %p121
      %p123 = scmp.ne.s32.totalorder %s115, %s117
      %p124 = scmp.eq.s32.totalorder %s23, 1
      %p125 = por %p123, %p124
      %p126 = scmp.ne.s32.totalorder %s117, %s118
      %p127 = scmp.eq.s32.totalorder %s23, 0
      %p128 = por %p126, %p127
      %p129 = scmp.ne.s32.totalorder %s117, %s118
      %p130 = scmp.eq.s32.totalorder %s24, 1
      %p131 = por %p129, %p130
      %p133 = scmp.ne.s32.totalorder %s118, %s132
      %p134 = scmp.eq.s32.totalorder %s24, 0
      %p135 = por %p133, %p134
      %s137 = sadd.s32 %s136, 1
      %p140 = scmp.eq.s32.totalorder %s18, 1
      %p141 = scmp.ne.s32.totalorder %s136, %s138
      %p142 = scmp.eq.s32.totalorder %s18, 0
      %p143 = por %p141, %p142
      %p144 = scmp.ne.s32.totalorder %s136, %s138
      %p145 = scmp.eq.s32.totalorder %s23, 1
      %p146 = por %p144, %p145
      %p147 = scmp.ne.s32.totalorder %s138, %s139
      %p148 = scmp.eq.s32.totalorder %s23, 0
      %p149 = por %p147, %p148
      %p150 = scmp.ne.s32.totalorder %s138, %s139
      %p151 = scmp.eq.s32.totalorder %s24, 1
      %p152 = por %p150, %p151
      %p154 = scmp.ne.s32.totalorder %s139, %s153
      %p155 = scmp.eq.s32.totalorder %s24, 0
      %p156 = por %p154, %p155
      %s158 = sadd.s32 %s157, 1
      %p161 = scmp.eq.s32.totalorder %s18, 1
      %p162 = scmp.ne.s32.totalorder %s157, %s159
      %p163 = scmp.eq.s32.totalorder %s18, 0
      %p164 = por %p162, %p163
      %p165 = scmp.ne.s32.totalorder %s157, %s159
      %p166 = scmp.eq.s32.totalorder %s23, 1
      %p167 = por %p165, %p166
      %p168 = scmp.ne.s32.totalorder %s159, %s160
      %p169 = scmp.eq.s32.totalorder %s23, 0
      %p170 = por %p168, %p169
      %p171 = scmp.ne.s32.totalorder %s159, %s160
      %p172 = scmp.eq.s32.totalorder %s24, 1
      %p173 = por %p171, %p172
      %p175 = scmp.ne.s32.totalorder %s160, %s174
      %p176 = scmp.eq.s32.totalorder %s24, 0
      %p177 = por %p175, %p176
      %s179 = sadd.s32 %s178, 1
      %p182 = scmp.eq.s32.totalorder %s18, 1
      %p183 = scmp.ne.s32.totalorder %s178, %s180
      %p184 = scmp.eq.s32.totalorder %s18, 0
      %p185 = por %p183, %p184
      %p186 = scmp.ne.s32.totalorder %s178, %s180
      %p187 = scmp.eq.s32.totalorder %s23, 1
      %p188 = por %p186, %p187
      %p189 = scmp.ne.s32.totalorder %s180, %s181
      %p190 = scmp.eq.s32.totalorder %s23, 0
      %p191 = por %p189, %p190
      %p192 = scmp.ne.s32.totalorder %s180, %s181
      %p193 = scmp.eq.s32.totalorder %s24, 1
      %p194 = por %p192, %p193
      %p196 = scmp.ne.s32.totalorder %s181, %s195
      %p197 = scmp.eq.s32.totalorder %s24, 0
      %p198 = por %p196, %p197
      %s199 = ssub.s32 %s25, %s37
      %s200 = ssub.s32 %s26, %s33
      %s201 = sor.u32 %s199, %s200
      %p202 = scmp.eq.s32.totalorder %s201, 0
      %s204 = sadd.s32 %s203, 1
      %s205 = scalar_select %p202, %s203, %s204
      %p208 = pneg %p202
      %p209 = scmp.eq.s32.totalorder %s18, 1
      %p210 = por %p208, %p209
      %p211 = scmp.ne.s32.totalorder %s203, %s206
      %p212 = scmp.eq.s32.totalorder %s18, 0
      %p213 = por %p211, %p212
      %p214 = scmp.ne.s32.totalorder %s203, %s206
      %p215 = scmp.eq.s32.totalorder %s23, 1
      %p216 = por %p214, %p215
      %p217 = scmp.ne.s32.totalorder %s206, %s207
      %p218 = scmp.eq.s32.totalorder %s23, 0
      %p219 = por %p217, %p218
      %p220 = scmp.ne.s32.totalorder %s206, %s207
      %p221 = scmp.eq.s32.totalorder %s24, 1
      %p222 = por %p220, %p221
      %p224 = scmp.ne.s32.totalorder %s207, %s223
      %p225 = scmp.eq.s32.totalorder %s24, 0
      %p226 = por %p224, %p225
      %p227 = scmp.le.s32.totalorder 1, %s18
      %p228 = scmp.lt.s32.totalorder %s18, 3
      %p229 = pnand %p227, %p228
      %p230 = pneg %p229
      // Predicated region
      $region9: #{tpu_custom_call.1} parent=5 // pred_check
        _
      $region10: #{tpu_custom_call.1} parent=5 // pred_check_branch
        %232 = sbr.rel (%p229) target = $region12
      $region11: #{tpu_custom_call.1} parent=5 // pred_region
        %s233 = ssub.s32 %s18, 1
        // Predicated region
        $region13: #{tpu_custom_call.1} parent=11 // pred_check
          %p234 = pneg %p107
        $region14: #{tpu_custom_call.1} parent=11 // pred_check_branch
          %236 = sbr.rel (%p234) target = $region16
        $region15: #{tpu_custom_call.1} parent=11 // pred_region
          _
        $region16: #{tpu_custom_call.1} parent=11 // pred_fallthru
          _
        // Predicated region
        $region17: #{tpu_custom_call.1} parent=11 // pred_check
          %p237 = pneg %p128
        $region18: #{tpu_custom_call.1} parent=11 // pred_check_branch
          %239 = sbr.rel (%p237) target = $region20
        $region19: #{tpu_custom_call.1} parent=11 // pred_region
          _
        $region20: #{tpu_custom_call.1} parent=11 // pred_fallthru
          _
        // Predicated region
        $region21: #{tpu_custom_call.1} parent=11 // pred_check
          %p240 = pneg %p149
        $region22: #{tpu_custom_call.1} parent=11 // pred_check_branch
          %242 = sbr.rel (%p240) target = $region24
        $region23: #{tpu_custom_call.1} parent=11 // pred_region
          _
        $region24: #{tpu_custom_call.1} parent=11 // pred_fallthru
          _
        // Predicated region
        $region25: #{tpu_custom_call.1} parent=11 // pred_check
          %p243 = pneg %p170
        $region26: #{tpu_custom_call.1} parent=11 // pred_check_branch
          %245 = sbr.rel (%p243) target = $region28
        $region27: #{tpu_custom_call.1} parent=11 // pred_region
          _
        $region28: #{tpu_custom_call.1} parent=11 // pred_fallthru
          _
        // Predicated region
        $region29: #{tpu_custom_call.1} parent=11 // pred_check
          %p246 = pneg %p191
        $region30: #{tpu_custom_call.1} parent=11 // pred_check_branch
          %248 = sbr.rel (%p246) target = $region32
        $region31: #{tpu_custom_call.1} parent=11 // pred_region
          _
        $region32: #{tpu_custom_call.1} parent=11 // pred_fallthru
          _
      $region12: #{tpu_custom_call.1} parent=5 // pred_fallthru
        _
      %p249 = scmp.lt.s32.totalorder %s18, 2
      // Predicated region
      $region33: #{tpu_custom_call.1} parent=5 // pred_check
        %p250 = pneg %p249
      $region34: #{tpu_custom_call.1} parent=5 // pred_check_branch
        %252 = sbr.rel (%p250) target = $region36
      $region35: #{tpu_custom_call.1} parent=5 // pred_region
        // Predicated region
        $region37: #{tpu_custom_call.1} parent=35 // pred_check
          %p253 = pneg %p52
        $region38: #{tpu_custom_call.1} parent=35 // pred_check_branch
          %255 = sbr.rel (%p253) target = $region40
        $region39: #{tpu_custom_call.1} parent=35 // pred_region
          %s256 = smul.u32 2, %s26
          %p257 = scmp.lt.s32.totalorder %s25, 1
          %s258 = scalar_select %p257, %s25, 1
          %p259 = scmp.lt.s32.totalorder %s256, 1
          %s260 = scalar_select %p259, %s256, 1
          %s261 = smul.addr %s258, 2
          %s262 = sadd.s32 %s260, %s261
          %s263 = smul.addr %s262, 2
          %s264 = scalar_lea.vmem %s0, %s263
          %s265 = smul.u32 2, %s26
        $region40: #{tpu_custom_call.1} parent=35 // pred_fallthru
          _
        // Predicated region
        $region41: #{tpu_custom_call.1} parent=35 // pred_check
          %p266 = pneg %p80
        $region42: #{tpu_custom_call.1} parent=35 // pred_check_branch
          %268 = sbr.rel (%p266) target = $region44
        $region43: #{tpu_custom_call.1} parent=35 // pred_region
          %s269 = smul.u32 2, %s26
          %p270 = scmp.lt.s32.totalorder %s25, 1
          %s271 = scalar_select %p270, %s25, 1
          %p272 = scmp.lt.s32.totalorder %s269, 1
          %s273 = scalar_select %p272, %s269, 1
          %s274 = smul.addr %s271, 2
          %s275 = sadd.s32 %s273, %s274
          %s276 = smul.addr %s275, 2
          %s277 = scalar_lea.vmem %s1, %s276
          %s278 = smul.u32 2, %s26
        $region44: #{tpu_custom_call.1} parent=35 // pred_fallthru
          _
      $region36: #{tpu_custom_call.1} parent=5 // pred_fallthru
        _
      %p279 = scmp.le.s32.totalorder 1, %s18
      %p280 = scmp.lt.s32.totalorder %s18, 3
      %p281 = pnand %p279, %p280
      %p282 = pneg %p281
      // Predicated region
      $region45: #{tpu_custom_call.1} parent=5 // pred_check
        _
      $region46: #{tpu_custom_call.1} parent=5 // pred_check_branch
        %284 = sbr.rel (%p281) target = $region48
      $region47: #{tpu_custom_call.1} parent=5 // pred_region
        %s285 = ssub.s32 %s18, 1
        %s286 = smul.u32 2, %s28
        %p287 = scmp.lt.s32.totalorder %s27, 1
        %s288 = scalar_select %p287, %s27, 1
        %p289 = scmp.lt.s32.totalorder %s286, 1
        %s290 = scalar_select %p289, %s286, 1
        %s291 = smul.addr %s288, 2
        %s292 = sadd.s32 %s290, %s291
        %s293 = smul.addr %s292, 2
        %s294 = scalar_lea.vmem %s0, %s293
        %p295 = pneg %p58
        %p296 = pneg %p55
        %s297 = smul.u32 2, %s28
        %p298 = scmp.lt.s32.totalorder %s27, 1
        %s299 = scalar_select %p298, %s27, 1
        %p300 = scmp.lt.s32.totalorder %s297, 1
        %s301 = scalar_select %p300, %s297, 1
        %s302 = smul.addr %s299, 2
        %s303 = sadd.s32 %s301, %s302
        %s304 = smul.addr %s303, 2
        %s305 = scalar_lea.vmem %s1, %s304
        %p306 = pneg %p86
        %p307 = pneg %p83
        %p308 = pneg %p107
        %p309 = pneg %p104
        %p310 = pneg %p128
        %p311 = pneg %p125
        %p312 = pneg %p149
        %p313 = pneg %p146
        %p314 = pneg %p170
        %p315 = pneg %p167
        %p316 = pneg %p191
        %p317 = pneg %p188
        %p318 = pneg %p219
        %p319 = pneg %p216
        %s320 = sand.u32 %s206, 1
        %s321 = scalar_lea.sflag [#allocation4], %s320
        %s322 = sand.u32 %s206, 1
        %s323 = smul.addr %s322, 4
        %s324 = scalar_lea.vmem [#allocation3], %s323
        %s325 = smul.u32 2, %s28
        %p326 = scmp.lt.s32.totalorder %s27, 1
        %s327 = scalar_select %p326, %s27, 1
        %p328 = scmp.lt.s32.totalorder %s325, 1
        %s329 = scalar_select %p328, %s325, 1
        %s330 = smul.addr %s327, 2
        %s331 = sadd.s32 %s329, %s330
        %s332 = smul.addr %s331, 2
        %s333 = scalar_lea.vmem %s0, %s332
        %s334 = smul.u32 2, %s28
        %s335 = smul.u32 2, %s28
        %p336 = scmp.lt.s32.totalorder %s27, 1
        %s337 = scalar_select %p336, %s27, 1
        %p338 = scmp.lt.s32.totalorder %s335, 1
        %s339 = scalar_select %p338, %s335, 1
        %s340 = smul.addr %s337, 2
        %s341 = sadd.s32 %s339, %s340
        %s342 = smul.addr %s341, 2
        %s343 = scalar_lea.vmem %s1, %s342
        %s344 = smul.u32 2, %s28
        %s345 = smul.u32 2, %s28
        %v347 = vld [vmem:[%s333] sm:$0xf]
        %v348 = vld [vmem:[%s343] sm:$0xf]
        %v349 = vld [vmem:[%s2] sm:$0xf]
        %v350 = vld [vmem:[%s3] sm:$0xf]
        %v353 = vunpack.c.l.s4 1983009808
        %v354 = vunpack.c.0.s8 %v353
        %v355 = vlaneseq
        %v356 = vshrl.u32 %v355, 7
        %v357 = vsub.s32 %v354, %v356
        %v358 = vrot.slane %v348, %v357
        %v359 = vcombine.high %v358, %v358
        %vm360 = vcmask 31744
        %v362 = vsel %vm360, %v350, 0
        %vm364 = vcmask 1041408
        %v366 = vsel %vm364, %v358, 0
        %v369 = vsel %vm364, %v359, 0
        %371 = vmatprep.subr.bf16.mxu0 %v369
        %372 = vmatpush1.bf16.msra.mxu0 %v366
        %373 = vmatprep.subr.bf16.mxu0 0
        %374 = vmatpush1.bf16.msra.mxu0 0
        %375 = vmatprep.subr.bf16.mxu0 0
        %376 = vmatpush1.bf16.msra.mxu0 0
        %377 = vmatprep.subr.bf16.mxu0 0
        %378 = vmatpush1.bf16.msra.mxu0 0
        %379 = vmatprep.subr.bf16.mxu0 0
        %380 = vmatpush1.bf16.msra.mxu0 0
        %381 = vmatprep.subr.bf16.mxu0 0
        %382 = vmatpush1.bf16.msra.mxu0 0
        %383 = vmatprep.subr.bf16.mxu0 0
        %384 = vmatpush1.bf16.msra.mxu0 0
        %385 = vmatprep.subr.bf16.mxu0 0
        %386 = vmatpush1.bf16.msra.mxu0 0
        %387 = vmatprep.subr.bf16.mxu0 0
        %388 = vmatpush1.bf16.msra.mxu0 0
        %389 = vmatprep.subr.bf16.mxu0 0
        %390 = vmatpush1.bf16.msra.mxu0 0
        %391 = vmatprep.subr.bf16.mxu0 0
        %392 = vmatpush1.bf16.msra.mxu0 0
        %393 = vmatprep.subr.bf16.mxu0 0
        %394 = vmatpush1.bf16.msra.mxu0 0
        %395 = vmatprep.subr.bf16.mxu0 0
        %396 = vmatpush1.bf16.msra.mxu0 0
        %397 = vmatprep.subr.bf16.mxu0 0
        %398 = vmatpush1.bf16.msra.mxu0 0
        %399 = vmatprep.subr.bf16.mxu0 0
        %400 = vmatpush1.bf16.msra.mxu0 0
        %401 = vmatprep.subr.bf16.mxu0 0
        %402 = vmatpush1.bf16.msra.mxu0 0
        %403 = vmatprep.mubr.bf16.mxu0 0
        %404 = vmatmul.mubr.bf16.gmra.mrb[0].mxu0 %v362
        %v405 = vpop.f32.mrb[0].mxu0
        %v406 = vadd.f32 0.0, %v405
        %v407 = vpop.f32.mrb[0].mxu0
        %v408 = vadd.f32 0.0, %v407
        %v409 = vpop.f32.mrb[0].mxu0
        %v410 = vpop.f32.mrb[0].mxu0
        %411 = vdwg.mxu0
        %v414 = vunpack.c.l.s4 1983009808
        %v415 = vunpack.c.0.s8 %v414
        %v416 = vlaneseq
        %v417 = vshrl.u32 %v416, 7
        %v418 = vsub.s32 %v415, %v417
        %v419 = vrot.slane %v347, %v418
        %v420 = vcombine.high %v419, %v419
        %v422 = vsel %vm360, %v349, 0
        %v425 = vsel %vm364, %v419, 0
        %v428 = vsel %vm364, %v420, 0
        %430 = vmatprep.subr.bf16.mxu0 %v428
        %431 = vmatpush1.bf16.msra.mxu0 %v425
        %432 = vmatprep.subr.bf16.mxu0 0
        %433 = vmatpush1.bf16.msra.mxu0 0
        %434 = vmatprep.subr.bf16.mxu0 0
        %435 = vmatpush1.bf16.msra.mxu0 0
        %436 = vmatprep.subr.bf16.mxu0 0
        %437 = vmatpush1.bf16.msra.mxu0 0
        %438 = vmatprep.subr.bf16.mxu0 0
        %439 = vmatpush1.bf16.msra.mxu0 0
        %440 = vmatprep.subr.bf16.mxu0 0
        %441 = vmatpush1.bf16.msra.mxu0 0
        %442 = vmatprep.subr.bf16.mxu0 0
        %443 = vmatpush1.bf16.msra.mxu0 0
        %444 = vmatprep.subr.bf16.mxu0 0
        %445 = vmatpush1.bf16.msra.mxu0 0
        %446 = vmatprep.subr.bf16.mxu0 0
        %447 = vmatpush1.bf16.msra.mxu0 0
        %448 = vmatprep.subr.bf16.mxu0 0
        %449 = vmatpush1.bf16.msra.mxu0 0
        %450 = vmatprep.subr.bf16.mxu0 0
        %451 = vmatpush1.bf16.msra.mxu0 0
        %452 = vmatprep.subr.bf16.mxu0 0
        %453 = vmatpush1.bf16.msra.mxu0 0
        %454 = vmatprep.subr.bf16.mxu0 0
        %455 = vmatpush1.bf16.msra.mxu0 0
        %456 = vmatprep.subr.bf16.mxu0 0
        %457 = vmatpush1.bf16.msra.mxu0 0
        %458 = vmatprep.subr.bf16.mxu0 0
        %459 = vmatpush1.bf16.msra.mxu0 0
        %460 = vmatprep.subr.bf16.mxu0 0
        %461 = vmatpush1.bf16.msra.mxu0 0
        %462 = vmatprep.mubr.bf16.mxu0 0
        %463 = vmatmul.mubr.bf16.gmra.mrb[0].mxu0 %v422
        %v464 = vpop.f32.mrb[0].mxu0
        %v465 = vadd.f32 %v406, %v464
        %v466 = vpop.f32.mrb[0].mxu0
        %v467 = vadd.f32 %v408, %v466
        %v468 = vpop.f32.mrb[0].mxu0
        %v469 = vpop.f32.mrb[0].mxu0
        %470 = vdwg.mxu0
        %v471 = vld [vmem:[%s4] sm:$0xff]
        %473 = vset.pattern.permute.xlu0 0
        %474 = vperm.xlu0 %473, %v471
        %v475 = vpop.permute.xlu0 %474
        %v477 = vadd.f32 %v465, %v475
        %v478 = vadd.f32 %v467, %v475
        %v479 = vmax.f32 %v477, 0.0
        %v480 = vmax.f32 %v478, 0.0
        %v481 = vld [vmem:[%s5] sm:$0xff]
        %483 = vset.pattern.permute.xlu0 0
        %484 = vperm.xlu0 %483, %v481
        %v485 = vpop.permute.xlu0 %484
        %v487 = vmul.f32 %v479, %v485
        %v488 = vmul.f32 %v480, %v485
        %v489 = vrot.slane %v487, 4
        %v490 = vadd.f32 %v487, %v489
        %v491 = vrot.slane %v490, 2
        %v492 = vadd.f32 %v490, %v491
        %v493 = vrot.slane %v492, 1
        %v494 = vadd.f32 %v492, %v493
        %v495 = vrot.slane %v488, 4
        %v496 = vadd.f32 %v488, %v495
        %v497 = vrot.slane %v496, 2
        %v498 = vadd.f32 %v496, %v497
        %v499 = vrot.slane %v498, 1
        %v500 = vadd.f32 %v498, %v499
        %v501 = vld [vmem:[#allocation2] sm:$0x1]
        %503 = vset.pattern.permute.xlu0 0
        %504 = vperm.xlu0 %503, %v501
        %v505 = vpop.permute.xlu0 %504
        %v507 = vlaneseq
        %v508 = vshrl.u32 %v507, 7
        %v509 = vsub.s32 0, %v508
        %v510 = vrot.slane %v505, %v509
        %v511 = vadd.f32 %v494, %v510
        %v512 = vadd.f32 %v500, %v510
        %v513 = vxor.u32 %v511, 2147483648
        %v514 = vxor.u32 %v512, 2147483648
        %v515 = vmul.f32 %v513, 1.442695
        %v516 = vpow.pop %v515
        %v517 = vmul.f32 %v514, 1.442695
        %v518 = vpow.pop %v517
        %v519 = vadd.f32 %v516, 1.0
        %v520 = vadd.f32 %v518, 1.0
        %v521 = vrcp.pop %v519
        %v522 = vmul.f32 1.0, %v521
        %v523 = vrcp.pop %v520
        %v524 = vmul.f32 1.0, %v523
        %v525 = vunpack.c.l.bf16 %v348
        %v528 = vcombine.low %v522, %v524
        %v530 = vmul.f32 %v525, %v528
        %v532 = vcombine.high %v530, %v530
        %v534 = vpack.c.bf16 %v530, %v530
        %v535 = vpack.c.bf16 %v532, %v532
        %v538 = vcombine.low %v534, %v535
        %v540 = vunpack.c.l.s4 1983009808
        %v541 = vunpack.c.0.s8 %v540
        %v542 = vlaneseq
        %v543 = vshrl.u32 %v542, 7
        %v544 = vsub.s32 %v541, %v543
        %v545 = vrot.slane %v538, %v544
        %547 = vst [vmem:[%s324] sm:$0xf] %v545
        %s548 = sand.u32 %s206, 1
        %s549 = scalar_lea.sflag [#allocation4], %s548
        %s550 = sand.u32 %s206, 1
        %s551 = smul.addr %s550, 4
        %s552 = scalar_lea.vmem [#allocation3], %s551
        // Predicated region
        $region49: #{tpu_custom_call.1} parent=47 // pred_check
          %p553 = pneg %p216
        $region50: #{tpu_custom_call.1} parent=47 // pred_check_branch
          %555 = sbr.rel (%p553) target = $region52
        $region51: #{tpu_custom_call.1} parent=47 // pred_region
          %s556 = smul.u32 2, %s28
          %s558 = ssub.s32 64, 64
          %559 = vsyncadd %s549, %s558
          %s560 = smul.addr %s27, 2
          %s561 = sadd.s32 %s556, %s560
          %s562 = smul.addr %s561, 32
          %s563 = scalar_lea.hbm %s7, %s562
          %s565 = sshll.u32 %s552, 4
          %s566 = int_to_ptr.vmem [resolvable:$true] %s565
          %568 = dma.vmem_to_hbm [thread:$0]  %s566, 64, %s563, %s549
        $region52: #{tpu_custom_call.1} parent=47 // pred_fallthru
          _
      $region48: #{tpu_custom_call.1} parent=5 // pred_fallthru
        _
      %p569 = scmp.le.s32.totalorder 2, %s18
      // Predicated region
      $region53: #{tpu_custom_call.1} parent=5 // pred_check
        %p570 = pneg %p569
      $region54: #{tpu_custom_call.1} parent=5 // pred_check_branch
        %572 = sbr.rel (%p570) target = $region56
      $region55: #{tpu_custom_call.1} parent=5 // pred_region
        %s573 = ssub.s32 %s18, 2
        // Predicated region
        $region57: #{tpu_custom_call.1} parent=55 // pred_check
          %p574 = pneg %p222
        $region58: #{tpu_custom_call.1} parent=55 // pred_check_branch
          %576 = sbr.rel (%p574) target = $region60
        $region59: #{tpu_custom_call.1} parent=55 // pred_region
          %s577 = sand.u32 %s207, 1
          %s578 = scalar_lea.sflag [#allocation4], %s577
          %s579 = sand.u32 %s207, 1
          %s580 = smul.addr %s579, 4
          %s581 = scalar_lea.vmem [#allocation3], %s580
          %582 = dma.done %s578, 64
        $region60: #{tpu_custom_call.1} parent=55 // pred_fallthru
          _
      $region56: #{tpu_custom_call.1} parent=5 // pred_fallthru
        _
    $region6: #{tpu_custom_call.1} parent=1 // loop_footer
      %s22 = sadd.s32 1, %s18
    $region7: #{tpu_custom_call.1} parent=1 // loop_footer_branch
      %17 = sbr.rel target = $region3
    $region8: #{tpu_custom_call.1} parent=1 // loop_exit
      _
    %583 = vsyncpa [#allocation4], 1
    %s584 = scalar_lea.sflag [#allocation4], 1
    %585 = vsyncpa %s584, 1

</llo_original>
